<compile_context>
chip_gen: v5e
topology: v5e:2x2
jax: 0.10.0
libtpu: 0.0.40
codegen_flags: <defaults>
</compile_context>

<pallas_src>
import jax
import jax.numpy as jnp
from jax.experimental import pallas as pl
from jax.experimental.pallas import tpu as pltpu


def _awl_kernel(x_ref, out_ref):
    # x_ref: (2, num) f32 in VMEM; row 0 = params (sigmas), row 1 = losses.
    x = x_ref[...]
    p = x[0:1, :]                              # (1, num)
    l = x[1:2, :]                              # (1, num)
    p2 = p * p
    inv_p2 = pl.reciprocal(p2, approx=False)   # EUP reciprocal; VALU stays free
    weighted = 0.5 * l * inv_p2                # 0.5 / sigma_i^2 * loss_i
    # TODO(synk): jnp.log1p(p2) would be marginally more accurate for tiny sigma;
    # kept as log(1 + p2) to mirror the PyTorch reference exactly.
    reg = jnp.log(1.0 + p2)                    # log(1 + sigma_i^2)
    out_ref[0, 0] = jnp.sum(weighted + reg)    # scalar store straight to SMEM


def _awl_pallas(params, losses):
    """params: (num,) f32, losses: (num,) f32  ->  () f32 scalar."""
    num = params.shape[0]
    # Pack both vectors into one (2, num) array -> single input DMA.
    x = jnp.stack(
        [params.astype(jnp.float32), losses.astype(jnp.float32)], axis=0
    )
    out = pl.pallas_call(
        _awl_kernel,
        out_shape=jax.ShapeDtypeStruct((1, 1), jnp.float32),
        in_specs=[pl.BlockSpec(memory_space=pltpu.MemorySpace.VMEM)],
        # Scalar output lives in SMEM: avoids a masked (1,1) VMEM vector store
        # and its padded-tile writeback.
        out_specs=pl.BlockSpec(memory_space=pltpu.MemorySpace.SMEM),
        # Tiny, accurate cost hint so XLA can schedule/overlap around the call.
        cost_estimate=pl.CostEstimate(
            flops=6 * num, transcendentals=2 * num, bytes_accessed=8 * num + 4
        ),
    )(x)
    return out[0, 0]


# --- differentiable wrapper --------------------------------------------------
# pallas_call is not reverse-mode differentiable by default; without a custom
# VJP the learned sigmas would silently receive no gradient.  Backward is
# exact, closed-form, pure JAX (XLA fuses it for free; no second kernel).

@jax.custom_vjp
def _awl(params, losses):
    return _awl_pallas(params, losses)


def _awl_fwd(params, losses):
    return _awl_pallas(params, losses), (params, losses)


def _awl_bwd(residuals, g):
    params, losses = residuals
    p2 = params * params
    # d/dp_i [0.5*l_i/p_i^2 + log(1+p_i^2)] = -l_i/p_i^3 + 2 p_i/(1+p_i^2)
    d_params = g * (-losses / (p2 * params) + 2.0 * params / (1.0 + p2))
    # d/dl_i = 0.5 / p_i^2
    d_losses = g * (0.5 / p2)
    return d_params, d_losses


_awl.defvjp(_awl_fwd, _awl_bwd)


def automatic_weighted_loss(params, *losses):
    """Mirrors AutomaticWeightedLoss.forward(*x); `params` is the learned (num,) vector.

    Accepts either individual scalar losses (like the PyTorch forward) or a
    single already-stacked (num,) vector.
    """
    if len(losses) == 1 and jnp.ndim(losses[0]) == 1:
        l = jnp.asarray(losses[0], dtype=jnp.float32)
    else:
        l = jnp.asarray(losses, dtype=jnp.float32).reshape(len(losses))
    return _awl(params.astype(jnp.float32), l)


if __name__ == "__main__":
    num = 2

    # Deterministic parameter init, matching torch.ones(num) in __init__.
    params = jnp.ones((num,), dtype=jnp.float32)

    # Small synthetic per-task scalar losses.
    key = jax.random.PRNGKey(0)
    loss_vals = jax.random.uniform(
        key, (num,), dtype=jnp.float32, minval=0.5, maxval=2.0
    )

    result = automatic_weighted_loss(params, loss_vals[0], loss_vals[1])
    result = jax.block_until_ready(result)

    # Pure-JAX forward reference.
    p2 = params ** 2
    ref = jnp.sum(0.5 / p2 * loss_vals + jnp.log(1.0 + p2))
    assert jnp.allclose(result, ref, rtol=1e-5, atol=1e-5), (result, ref)

    # Also exercise the stacked-vector call path.
    result2 = jax.block_until_ready(automatic_weighted_loss(params, loss_vals))
    assert jnp.allclose(result2, ref, rtol=1e-5, atol=1e-5), (result2, ref)

    # Gradient check: custom_vjp backward vs. jax.grad of the pure-JAX reference.
    def ref_fn(p, l):
        pp = p * p
        return jnp.sum(0.5 / pp * l + jnp.log(1.0 + pp))

    g_kernel = jax.grad(lambda p: _awl(p, loss_vals))(params)
    g_ref = jax.grad(ref_fn)(params, loss_vals)
    g_kernel = jax.block_until_ready(g_kernel)
    assert jnp.allclose(g_kernel, g_ref, rtol=1e-5, atol=1e-5), (g_kernel, g_ref)

    print("KERNEL_OK")
</pallas_src>

<mosaic_0001>
module attributes {stable_mosaic.version = 11 : i64} {
  func.func @_awl_kernel(%arg0: memref<2x2xf32, #tpu.memory_space<vmem>>, %arg1: memref<1x1xf32, #tpu.memory_space<smem>>) attributes {dimension_semantics = [], scalar_prefetch = 0 : i64, scratch_operands = 0 : i64, tpu.core_type = #tpu.core_type<tc>} {
    %c0 = arith.constant 0 : index
    %c0_0 = arith.constant 0 : index
    %0 = vector.load %arg0[%c0, %c0_0] : memref<2x2xf32, #tpu.memory_space<vmem>>, vector<2x2xf32>
    %1 = vector.extract_strided_slice %0 {offsets = [0, 0], sizes = [1, 2], strides = [1, 1]} : vector<2x2xf32> to vector<1x2xf32>
    %2 = vector.extract_strided_slice %0 {offsets = [1, 0], sizes = [1, 2], strides = [1, 1]} : vector<2x2xf32> to vector<1x2xf32>
    %3 = arith.mulf %1, %1 : vector<1x2xf32>
    %4 = tpu.reciprocal %3 : vector<1x2xf32> -> vector<1x2xf32>
    %cst = arith.constant 5.000000e-01 : f32
    %5 = vector.broadcast %cst : f32 to vector<1x2xf32>
    %6 = arith.mulf %5, %2 : vector<1x2xf32>
    %7 = arith.mulf %6, %4 : vector<1x2xf32>
    %cst_1 = arith.constant 1.000000e+00 : f32
    %8 = vector.broadcast %cst_1 : f32 to vector<1x2xf32>
    %9 = arith.addf %8, %3 : vector<1x2xf32>
    %10 = math.log %9 : vector<1x2xf32>
    %11 = arith.addf %7, %10 : vector<1x2xf32>
    %12 = vector.shape_cast %11 : vector<1x2xf32> to vector<1x1x2xf32>
    %cst_2 = arith.constant dense<0.000000e+00> : vector<1xf32>
    %13 = vector.multi_reduction <add>, %12, %cst_2 [1, 2] : vector<1x1x2xf32> to vector<1xf32>
    %14 = vector.shape_cast %13 : vector<1xf32> to vector<1x1x1xf32>
    %15 = vector.extract %14[0, 0, 0] : f32 from vector<1x1x1xf32>
    %c0_3 = arith.constant 0 : index
    %c0_4 = arith.constant 0 : index
    %16 = memref.load %arg1[%c0_3, %c0_4] : memref<1x1xf32, #tpu.memory_space<smem>>
    memref.store %15, %arg1[%c0_3, %c0_4] : memref<1x1xf32, #tpu.memory_space<smem>>
    return
  }
}

</mosaic_0001>

<llo_original>
// kernel: tpu_custom_call.1
$region0: #{tpu_custom_call.1}
  #allocation0 [shape = 'u32[]', space=smem, size = 0x4, offset = 0x4, fixed_abs, tag = 'smem constant byte address 0x4 - core index']
  #allocation1 [shape = 'u32[72,128]{1,0:T(1,128)}', space=vmem, size = 0x9000, scoped, tag = 'internal scratch']
  %s0 = inlined_call_operand.hbm [shape: f32[2,2], index: 0, kind: input, shape index: {}]
  %s1 = inlined_call_operand.hbm [shape: f32[1,1], index: 1, kind: output, shape index: {}]
  %s2 = sld [smem:[#allocation0]]
  $region18: #{tpu_custom_call.1} parent=0
    _
  %s4 = ssub.s32 1, %s2
  %s5 = scalar_select 0, %s4, %s2
  $region1: #{tpu_custom_call.1} parent=0
    #allocation2 [shape = 'u8[1024]{0}', space=vmem, size = 0x400, scoped, tag = 'input window, operand 0, single buffered']
    #allocation3 [shape = 's32[1]{0}', space=sflag, size = 0x4, scoped, tag = 'scoped memory for tpu_custom_call.1']
    #allocation4 [shape = 's32[1]{0}', space=sflag, size = 0x4, scoped, tag = 'scoped memory for tpu_custom_call.1']
    #allocation5 [shape = 'u8[512]{0}', space=smem, size = 0x200, scoped, tag = 'output window, operand 0, single buffered']
    %6 = vsyncpa [#allocation3], 0
    %7 = vsyncpa [#allocation4], 0
    // Predicated region
    $region2: #{tpu_custom_call.1} parent=1 // pred_check
      _
    $region3: #{tpu_custom_call.1} parent=1 // pred_check_branch
      %9 = sbr.rel (0) target = $region5
    $region4: #{tpu_custom_call.1} parent=1 // pred_region
      %11 = vsyncadd [#allocation3], 0
      %s13 = sshll.u32 %s0, 4
      %s14 = int_to_ptr.hbm [resolvable:$true] %s13
      %s15 = sshll.u32 [#allocation2], 4
      %s16 = int_to_ptr.vmem [resolvable:$true] %s15
      %18 = dma.hbm_to_vmem [thread:$0]  %s14, 32, %s16, [#allocation3]
    $region5: #{tpu_custom_call.1} parent=1 // pred_fallthru
      _
    // Predicated region
    $region6: #{tpu_custom_call.1} parent=1 // pred_check
      _
    $region7: #{tpu_custom_call.1} parent=1 // pred_check_branch
      %20 = sbr.rel (0) target = $region9
    $region8: #{tpu_custom_call.1} parent=1 // pred_region
      %22 = dma.done [#allocation3], 32
    $region9: #{tpu_custom_call.1} parent=1 // pred_fallthru
      _
    %v23 = vld [vmem:[#allocation2] sm:$0x3]
    %v24 = vmul.f32 %v23, %v23
    %v25 = vrcp.pop %v24
    %v26 = vmul.f32 %v24, %v25
    %v27 = vsub.f32 1.0, %v26
    %v28 = vmul.f32 %v25, %v27
    %v29 = vadd.f32 %v25, %v28
    %vm30 = vweird.f32 %v24
    %vm31 = vweird.f32 %v25
    %vm32 = vmor %vm30, %vm31
    %v33 = vsel %vm32, %v25, %v29
    %v34 = vand.u32 2147483647, %v24
    %vm35 = vcmp.eq.f32.partialorder %v34, 8.507059e+37
    %v36 = vand.u32 %v24, 2147483648
    %v37 = vor.u32 1.1754944e-38, %v36
    %v38 = vsel %vm35, %v37, %v33
    %v39 = vmul.f32 %v23, 0.5
    %v41 = vrot.slane %v38, 7
    %v43 = vmul.f32 %v39, %v41
    %v44 = vadd.f32 %v24, 1.0
    %v45 = vlog2.pop %v44
    %v46 = vmul.f32 %v45, 0.6931472
    %v48 = vrot.slane %v46, 7
    %v50 = vadd.f32 %v43, %v48
    %v52 = vrot.slane %v50, 1
    %vm54 = vcmask 8192
    %v55 = vsel %vm54, %v52, 0.0
    %56 = vadd.xlane.f32.xlu0 %v55
    %v57 = vpop.xlane.xlu0 %56
    %v58 = vrot.slane %v57, 4
    %v59 = vadd.f32 %v57, %v58
    %v60 = vrot.slane %v59, 2
    %v61 = vadd.f32 %v59, %v60
    %v62 = vrot.slane %v61, 1
    %v63 = vadd.f32 %v61, %v62
    %s64 = vtos %v63
    %s65 = scalar_lea.smem [#allocation5], 0
    %66 = sst [smem:[%s65]] %s64
    // Predicated region
    $region10: #{tpu_custom_call.1} parent=1 // pred_check
      _
    $region11: #{tpu_custom_call.1} parent=1 // pred_check_branch
      %68 = sbr.rel (0) target = $region13
    $region12: #{tpu_custom_call.1} parent=1 // pred_region
      %70 = vsyncadd [#allocation4], 0
      %s72 = sshll.u32 %s1, 4
      %s73 = int_to_ptr.hbm [resolvable:$true] %s72
      %75 = dma.smem_to_hbm [#allocation5], 16, %s73, [#allocation4]
    $region13: #{tpu_custom_call.1} parent=1 // pred_fallthru
      _
    // Predicated region
    $region14: #{tpu_custom_call.1} parent=1 // pred_check
      _
    $region15: #{tpu_custom_call.1} parent=1 // pred_check_branch
      %77 = sbr.rel (0) target = $region17
    $region16: #{tpu_custom_call.1} parent=1 // pred_region
      %79 = dma.done [#allocation4], 16
    $region17: #{tpu_custom_call.1} parent=1 // pred_fallthru
      _
    %80 = sfence
    %81 = vsyncpa [#allocation3], 1
    %82 = vsyncpa [#allocation4], 1

</llo_original>
